<compile_context>
chip_gen: v7x
topology: tpu7x:2x2x1
jax: 0.10.0
libtpu: 0.0.40
codegen_flags: <defaults>
</compile_context>

<pallas_src>
import jax
import jax.numpy as jnp
from jax.experimental import pallas as pl
from jax.experimental.pallas import tpu as pltpu


def cpg_counter_kernel(xg_ref, whh_ref, fcw_ref, fcb_ref, lw_ref, lb_ref, out_ref):
    """Serial LSTM recurrence + FC/ReLU/Linear head, single invocation.

    xg_ref : (T, B, 4H)  precomputed x @ W_ih + (b_ih + b_hh), time-major,
                         gate column order [i, f, o, g]
    whh_ref: (H, 4H)     recurrent weights (transposed, gate order [i, f, o, g])
    fcw_ref: (H, H//2)   fc weight^T      fcb_ref: (1, H//2)
    lw_ref : (H//2, C)   liner weight^T   lb_ref : (1, C)
    out_ref: (B, C)      logits
    """
    T, B, H4 = xg_ref.shape
    H = whh_ref.shape[0]

    def step(t, carry):
        h, c = carry
        # Only the recurrent matmul sits on the serial critical path; the x
        # projection for this step was precomputed and is just a VMEM load.
        gates = xg_ref[t] + jnp.dot(h, whh_ref[...],
                                    preferred_element_type=jnp.float32)
        # Gate order [i, f, o | g]: one contiguous sigmoid slice, one tanh slice.
        sg = jax.nn.sigmoid(gates[:, :3 * H])
        g_g = jnp.tanh(gates[:, 3 * H:])
        i_g = sg[:, 0:H]
        f_g = sg[:, H:2 * H]
        o_g = sg[:, 2 * H:3 * H]
        c = f_g * c + i_g * g_g
        h = o_g * jnp.tanh(c)
        return (h, c)

    h0 = jnp.zeros((B, H), jnp.float32)
    c0 = jnp.zeros((B, H), jnp.float32)
    h_last, _ = jax.lax.fori_loop(0, T, step, (h0, c0), unroll=True)

    # fc -> relu -> dropout(identity in eval mode) -> liner
    z = jnp.dot(h_last, fcw_ref[...], preferred_element_type=jnp.float32) + fcb_ref[...]
    z = jnp.maximum(z, 0.0)
    logits = jnp.dot(z, lw_ref[...], preferred_element_type=jnp.float32) + lb_ref[...]
    out_ref[...] = logits.astype(out_ref.dtype)


def cpg_counter_forward(x, params):
    """x: (B, T, I) float32 batch_first (like PyTorch). Returns (B, num_classes)."""
    B, T, I = x.shape
    wih, whh, bias, fcw, fcb, lw, lb = params
    H = whh.shape[0]
    C = lw.shape[1]

    # Re-pack gate columns from PyTorch order [i, f, g, o] to [i, f, o, g] so the
    # kernel applies sigmoid/tanh to contiguous lane ranges.
    def reorder_gates(w):
        return jnp.concatenate(
            [w[..., 0:2 * H], w[..., 3 * H:4 * H], w[..., 2 * H:3 * H]], axis=-1)

    wih_r = reorder_gates(wih)
    whh_r = reorder_gates(whh)
    bias_r = reorder_gates(bias)

    # Hoist the non-recurrent input projection out of the serial loop: one
    # (T*B, I) @ (I, 4H) matmul for all timesteps, written time-major (T, B, 4H).
    xg = jnp.einsum('bti,ig->tbg', x, wih_r) + bias_r  # (T, B, 4H) float32

    vmem_specs = [pl.BlockSpec(memory_space=pltpu.MemorySpace.VMEM) for _ in range(6)]
    return pl.pallas_call(
        cpg_counter_kernel,
        out_shape=jax.ShapeDtypeStruct((B, C), jnp.float32),
        in_specs=vmem_specs,
        out_specs=pl.BlockSpec(memory_space=pltpu.MemorySpace.VMEM),
        # At these sizes everything (xg + weights + live state) trivially fits VMEM.
        # For production H/T, re-budget per generation (v7x: 64 MiB physical VMEM) via
        # pltpu.CompilerParams(vmem_limit_bytes=...) and prefer bf16 weights on v6e/v7x.
    )(xg, whh_r, fcw, fcb, lw, lb)


def init_params(key, input_size, hidden_size, num_classes=1):
    """Parameters in PyTorch gate order [i, f, g, o], stored transposed (in, out)."""
    H, I, H2 = hidden_size, input_size, hidden_size // 2
    ks = jax.random.split(key, 8)
    u = lambda k, shape, scale: jax.random.uniform(k, shape, jnp.float32, -scale, scale)
    s = 1.0 / jnp.sqrt(H)
    wih = u(ks[0], (I, 4 * H), s)                              # weight_ih_l0^T
    whh = u(ks[1], (H, 4 * H), s)                              # weight_hh_l0^T
    bias = u(ks[2], (1, 4 * H), s) + u(ks[3], (1, 4 * H), s)   # b_ih + b_hh
    fcw = u(ks[4], (H, H2), s)
    fcb = u(ks[5], (1, H2), s)
    sl = 1.0 / jnp.sqrt(H2)
    lw = u(ks[6], (H2, num_classes), sl)
    lb = u(ks[7], (1, num_classes), sl)
    return (wih, whh, bias, fcw, fcb, lw, lb)


def reference_forward(x, params):
    """Pure-JAX reference (PyTorch LSTM semantics, eval mode, gate order [i,f,g,o])."""
    wih, whh, bias, fcw, fcb, lw, lb = params
    B, T, I = x.shape
    H = whh.shape[0]

    def step(carry, x_t):
        h, c = carry
        gates = x_t @ wih + h @ whh + bias
        i = jax.nn.sigmoid(gates[:, 0 * H:1 * H])
        f = jax.nn.sigmoid(gates[:, 1 * H:2 * H])
        g = jnp.tanh(gates[:, 2 * H:3 * H])
        o = jax.nn.sigmoid(gates[:, 3 * H:4 * H])
        c = f * c + i * g
        h = o * jnp.tanh(c)
        return (h, c), None

    h0 = jnp.zeros((B, H), jnp.float32)
    c0 = jnp.zeros((B, H), jnp.float32)
    (h, _), _ = jax.lax.scan(step, (h0, c0), jnp.transpose(x, (1, 0, 2)))
    z = jnp.maximum(h @ fcw + fcb, 0.0)
    return z @ lw + lb


if __name__ == "__main__":
    B, T, I, H, C = 2, 8, 4, 32, 1   # batch, seq_len, input_size, hidden_size, classes

    key = jax.random.PRNGKey(0)
    kx, kp = jax.random.split(key)
    x = jax.random.normal(kx, (B, T, I), jnp.float32)
    params = init_params(kp, I, H, C)

    out = cpg_counter_forward(x, params)
    out = jax.block_until_ready(out)

    ref = reference_forward(x, params)
    assert out.shape == (B, C)
    assert jnp.allclose(out, ref, rtol=1e-4, atol=1e-4), (out, ref)

    print("KERNEL_OK")
</pallas_src>

<mosaic_0001>
module attributes {stable_mosaic.version = 11 : i64} {
  func.func @cpg_counter_kernel(%arg0: memref<8x2x128xf32, #tpu.memory_space<vmem>>, %arg1: memref<32x128xf32, #tpu.memory_space<vmem>>, %arg2: memref<32x16xf32, #tpu.memory_space<vmem>>, %arg3: memref<1x16xf32, #tpu.memory_space<vmem>>, %arg4: memref<16x1xf32, #tpu.memory_space<vmem>>, %arg5: memref<1x1xf32, #tpu.memory_space<vmem>>, %arg6: memref<2x1xf32, #tpu.memory_space<vmem>>) attributes {dimension_semantics = [], scalar_prefetch = 0 : i64, scratch_operands = 0 : i64, tpu.core_type = #tpu.core_type<tc>} {
    %cst = arith.constant 0.000000e+00 : f32
    %0 = vector.broadcast %cst : f32 to vector<2x32xf32>
    %cst_0 = arith.constant 0.000000e+00 : f32
    %1 = vector.broadcast %cst_0 : f32 to vector<2x32xf32>
    %c0_i32 = arith.constant 0 : i32
    %2 = arith.index_cast %c0_i32 : i32 to index
    %c0 = arith.constant 0 : index
    %c0_1 = arith.constant 0 : index
    %3 = vector.load %arg0[%2, %c0, %c0_1] : memref<8x2x128xf32, #tpu.memory_space<vmem>>, vector<1x2x128xf32>
    %4 = vector.shape_cast %3 : vector<1x2x128xf32> to vector<2x128xf32>
    %c0_2 = arith.constant 0 : index
    %c0_3 = arith.constant 0 : index
    %5 = vector.load %arg1[%c0_2, %c0_3] : memref<32x128xf32, #tpu.memory_space<vmem>>, vector<32x128xf32>
    %cst_4 = arith.constant dense<0.000000e+00> : vector<2x128xf32>
    %6 = tpu.matmul %0, %5, %cst_4 {dimension_numbers = #tpu.dot_dimension_numbers<[1], [0], [0], [1], [0, 0, 1, 1], [], []>} : vector<2x32xf32>, vector<32x128xf32>, vector<2x128xf32> -> vector<2x128xf32>
    %7 = arith.addf %4, %6 : vector<2x128xf32>
    %8 = vector.extract_strided_slice %7 {offsets = [0, 0], sizes = [2, 96], strides = [1, 1]} : vector<2x128xf32> to vector<2x96xf32>
    %9 = arith.negf %8 : vector<2x96xf32>
    %10 = math.exp %9 : vector<2x96xf32>
    %cst_5 = arith.constant 1.000000e+00 : f32
    %11 = vector.broadcast %cst_5 : f32 to vector<2x96xf32>
    %12 = arith.addf %11, %10 : vector<2x96xf32>
    %13 = arith.divf %11, %12 : vector<2x96xf32>
    %14 = vector.extract_strided_slice %7 {offsets = [0, 96], sizes = [2, 32], strides = [1, 1]} : vector<2x128xf32> to vector<2x32xf32>
    %15 = math.tanh %14 : vector<2x32xf32>
    %16 = vector.extract_strided_slice %13 {offsets = [0, 0], sizes = [2, 32], strides = [1, 1]} : vector<2x96xf32> to vector<2x32xf32>
    %17 = vector.extract_strided_slice %13 {offsets = [0, 32], sizes = [2, 32], strides = [1, 1]} : vector<2x96xf32> to vector<2x32xf32>
    %18 = vector.extract_strided_slice %13 {offsets = [0, 64], sizes = [2, 32], strides = [1, 1]} : vector<2x96xf32> to vector<2x32xf32>
    %19 = arith.mulf %17, %1 : vector<2x32xf32>
    %20 = arith.mulf %16, %15 : vector<2x32xf32>
    %21 = arith.addf %19, %20 : vector<2x32xf32>
    %22 = math.tanh %21 : vector<2x32xf32>
    %23 = arith.mulf %18, %22 : vector<2x32xf32>
    %c1_i32 = arith.constant 1 : i32
    %24 = arith.index_cast %c1_i32 : i32 to index
    %c0_6 = arith.constant 0 : index
    %c0_7 = arith.constant 0 : index
    %25 = vector.load %arg0[%24, %c0_6, %c0_7] : memref<8x2x128xf32, #tpu.memory_space<vmem>>, vector<1x2x128xf32>
    %26 = vector.shape_cast %25 : vector<1x2x128xf32> to vector<2x128xf32>
    %c0_8 = arith.constant 0 : index
    %c0_9 = arith.constant 0 : index
    %27 = vector.load %arg1[%c0_8, %c0_9] : memref<32x128xf32, #tpu.memory_space<vmem>>, vector<32x128xf32>
    %cst_10 = arith.constant dense<0.000000e+00> : vector<2x128xf32>
    %28 = tpu.matmul %23, %27, %cst_10 {dimension_numbers = #tpu.dot_dimension_numbers<[1], [0], [0], [1], [0, 0, 1, 1], [], []>} : vector<2x32xf32>, vector<32x128xf32>, vector<2x128xf32> -> vector<2x128xf32>
    %29 = arith.addf %26, %28 : vector<2x128xf32>
    %30 = vector.extract_strided_slice %29 {offsets = [0, 0], sizes = [2, 96], strides = [1, 1]} : vector<2x128xf32> to vector<2x96xf32>
    %31 = arith.negf %30 : vector<2x96xf32>
    %32 = math.exp %31 : vector<2x96xf32>
    %cst_11 = arith.constant 1.000000e+00 : f32
    %33 = vector.broadcast %cst_11 : f32 to vector<2x96xf32>
    %34 = arith.addf %33, %32 : vector<2x96xf32>
    %35 = arith.divf %33, %34 : vector<2x96xf32>
    %36 = vector.extract_strided_slice %29 {offsets = [0, 96], sizes = [2, 32], strides = [1, 1]} : vector<2x128xf32> to vector<2x32xf32>
    %37 = math.tanh %36 : vector<2x32xf32>
    %38 = vector.extract_strided_slice %35 {offsets = [0, 0], sizes = [2, 32], strides = [1, 1]} : vector<2x96xf32> to vector<2x32xf32>
    %39 = vector.extract_strided_slice %35 {offsets = [0, 32], sizes = [2, 32], strides = [1, 1]} : vector<2x96xf32> to vector<2x32xf32>
    %40 = vector.extract_strided_slice %35 {offsets = [0, 64], sizes = [2, 32], strides = [1, 1]} : vector<2x96xf32> to vector<2x32xf32>
    %41 = arith.mulf %39, %21 : vector<2x32xf32>
    %42 = arith.mulf %38, %37 : vector<2x32xf32>
    %43 = arith.addf %41, %42 : vector<2x32xf32>
    %44 = math.tanh %43 : vector<2x32xf32>
    %45 = arith.mulf %40, %44 : vector<2x32xf32>
    %c2_i32 = arith.constant 2 : i32
    %46 = arith.index_cast %c2_i32 : i32 to index
    %c0_12 = arith.constant 0 : index
    %c0_13 = arith.constant 0 : index
    %47 = vector.load %arg0[%46, %c0_12, %c0_13] : memref<8x2x128xf32, #tpu.memory_space<vmem>>, vector<1x2x128xf32>
    %48 = vector.shape_cast %47 : vector<1x2x128xf32> to vector<2x128xf32>
    %c0_14 = arith.constant 0 : index
    %c0_15 = arith.constant 0 : index
    %49 = vector.load %arg1[%c0_14, %c0_15] : memref<32x128xf32, #tpu.memory_space<vmem>>, vector<32x128xf32>
    %cst_16 = arith.constant dense<0.000000e+00> : vector<2x128xf32>
    %50 = tpu.matmul %45, %49, %cst_16 {dimension_numbers = #tpu.dot_dimension_numbers<[1], [0], [0], [1], [0, 0, 1, 1], [], []>} : vector<2x32xf32>, vector<32x128xf32>, vector<2x128xf32> -> vector<2x128xf32>
    %51 = arith.addf %48, %50 : vector<2x128xf32>
    %52 = vector.extract_strided_slice %51 {offsets = [0, 0], sizes = [2, 96], strides = [1, 1]} : vector<2x128xf32> to vector<2x96xf32>
    %53 = arith.negf %52 : vector<2x96xf32>
    %54 = math.exp %53 : vector<2x96xf32>
    %cst_17 = arith.constant 1.000000e+00 : f32
    %55 = vector.broadcast %cst_17 : f32 to vector<2x96xf32>
    %56 = arith.addf %55, %54 : vector<2x96xf32>
    %57 = arith.divf %55, %56 : vector<2x96xf32>
    %58 = vector.extract_strided_slice %51 {offsets = [0, 96], sizes = [2, 32], strides = [1, 1]} : vector<2x128xf32> to vector<2x32xf32>
    %59 = math.tanh %58 : vector<2x32xf32>
    %60 = vector.extract_strided_slice %57 {offsets = [0, 0], sizes = [2, 32], strides = [1, 1]} : vector<2x96xf32> to vector<2x32xf32>
    %61 = vector.extract_strided_slice %57 {offsets = [0, 32], sizes = [2, 32], strides = [1, 1]} : vector<2x96xf32> to vector<2x32xf32>
    %62 = vector.extract_strided_slice %57 {offsets = [0, 64], sizes = [2, 32], strides = [1, 1]} : vector<2x96xf32> to vector<2x32xf32>
    %63 = arith.mulf %61, %43 : vector<2x32xf32>
    %64 = arith.mulf %60, %59 : vector<2x32xf32>
    %65 = arith.addf %63, %64 : vector<2x32xf32>
    %66 = math.tanh %65 : vector<2x32xf32>
    %67 = arith.mulf %62, %66 : vector<2x32xf32>
    %c3_i32 = arith.constant 3 : i32
    %68 = arith.index_cast %c3_i32 : i32 to index
    %c0_18 = arith.constant 0 : index
    %c0_19 = arith.constant 0 : index
    %69 = vector.load %arg0[%68, %c0_18, %c0_19] : memref<8x2x128xf32, #tpu.memory_space<vmem>>, vector<1x2x128xf32>
    %70 = vector.shape_cast %69 : vector<1x2x128xf32> to vector<2x128xf32>
    %c0_20 = arith.constant 0 : index
    %c0_21 = arith.constant 0 : index
    %71 = vector.load %arg1[%c0_20, %c0_21] : memref<32x128xf32, #tpu.memory_space<vmem>>, vector<32x128xf32>
    %cst_22 = arith.constant dense<0.000000e+00> : vector<2x128xf32>
    %72 = tpu.matmul %67, %71, %cst_22 {dimension_numbers = #tpu.dot_dimension_numbers<[1], [0], [0], [1], [0, 0, 1, 1], [], []>} : vector<2x32xf32>, vector<32x128xf32>, vector<2x128xf32> -> vector<2x128xf32>
    %73 = arith.addf %70, %72 : vector<2x128xf32>
    %74 = vector.extract_strided_slice %73 {offsets = [0, 0], sizes = [2, 96], strides = [1, 1]} : vector<2x128xf32> to vector<2x96xf32>
    %75 = arith.negf %74 : vector<2x96xf32>
    %76 = math.exp %75 : vector<2x96xf32>
    %cst_23 = arith.constant 1.000000e+00 : f32
    %77 = vector.broadcast %cst_23 : f32 to vector<2x96xf32>
    %78 = arith.addf %77, %76 : vector<2x96xf32>
    %79 = arith.divf %77, %78 : vector<2x96xf32>
    %80 = vector.extract_strided_slice %73 {offsets = [0, 96], sizes = [2, 32], strides = [1, 1]} : vector<2x128xf32> to vector<2x32xf32>
    %81 = math.tanh %80 : vector<2x32xf32>
    %82 = vector.extract_strided_slice %79 {offsets = [0, 0], sizes = [2, 32], strides = [1, 1]} : vector<2x96xf32> to vector<2x32xf32>
    %83 = vector.extract_strided_slice %79 {offsets = [0, 32], sizes = [2, 32], strides = [1, 1]} : vector<2x96xf32> to vector<2x32xf32>
    %84 = vector.extract_strided_slice %79 {offsets = [0, 64], sizes = [2, 32], strides = [1, 1]} : vector<2x96xf32> to vector<2x32xf32>
    %85 = arith.mulf %83, %65 : vector<2x32xf32>
    %86 = arith.mulf %82, %81 : vector<2x32xf32>
    %87 = arith.addf %85, %86 : vector<2x32xf32>
    %88 = math.tanh %87 : vector<2x32xf32>
    %89 = arith.mulf %84, %88 : vector<2x32xf32>
    %c4_i32 = arith.constant 4 : i32
    %90 = arith.index_cast %c4_i32 : i32 to index
    %c0_24 = arith.constant 0 : index
    %c0_25 = arith.constant 0 : index
    %91 = vector.load %arg0[%90, %c0_24, %c0_25] : memref<8x2x128xf32, #tpu.memory_space<vmem>>, vector<1x2x128xf32>
    %92 = vector.shape_cast %91 : vector<1x2x128xf32> to vector<2x128xf32>
    %c0_26 = arith.constant 0 : index
    %c0_27 = arith.constant 0 : index
    %93 = vector.load %arg1[%c0_26, %c0_27] : memref<32x128xf32, #tpu.memory_space<vmem>>, vector<32x128xf32>
    %cst_28 = arith.constant dense<0.000000e+00> : vector<2x128xf32>
    %94 = tpu.matmul %89, %93, %cst_28 {dimension_numbers = #tpu.dot_dimension_numbers<[1], [0], [0], [1], [0, 0, 1, 1], [], []>} : vector<2x32xf32>, vector<32x128xf32>, vector<2x128xf32> -> vector<2x128xf32>
    %95 = arith.addf %92, %94 : vector<2x128xf32>
    %96 = vector.extract_strided_slice %95 {offsets = [0, 0], sizes = [2, 96], strides = [1, 1]} : vector<2x128xf32> to vector<2x96xf32>
    %97 = arith.negf %96 : vector<2x96xf32>
    %98 = math.exp %97 : vector<2x96xf32>
    %cst_29 = arith.constant 1.000000e+00 : f32
    %99 = vector.broadcast %cst_29 : f32 to vector<2x96xf32>
    %100 = arith.addf %99, %98 : vector<2x96xf32>
    %101 = arith.divf %99, %100 : vector<2x96xf32>
    %102 = vector.extract_strided_slice %95 {offsets = [0, 96], sizes = [2, 32], strides = [1, 1]} : vector<2x128xf32> to vector<2x32xf32>
    %103 = math.tanh %102 : vector<2x32xf32>
    %104 = vector.extract_strided_slice %101 {offsets = [0, 0], sizes = [2, 32], strides = [1, 1]} : vector<2x96xf32> to vector<2x32xf32>
    %105 = vector.extract_strided_slice %101 {offsets = [0, 32], sizes = [2, 32], strides = [1, 1]} : vector<2x96xf32> to vector<2x32xf32>
    %106 = vector.extract_strided_slice %101 {offsets = [0, 64], sizes = [2, 32], strides = [1, 1]} : vector<2x96xf32> to vector<2x32xf32>
    %107 = arith.mulf %105, %87 : vector<2x32xf32>
    %108 = arith.mulf %104, %103 : vector<2x32xf32>
    %109 = arith.addf %107, %108 : vector<2x32xf32>
    %110 = math.tanh %109 : vector<2x32xf32>
    %111 = arith.mulf %106, %110 : vector<2x32xf32>
    %c5_i32 = arith.constant 5 : i32
    %112 = arith.index_cast %c5_i32 : i32 to index
    %c0_30 = arith.constant 0 : index
    %c0_31 = arith.constant 0 : index
    %113 = vector.load %arg0[%112, %c0_30, %c0_31] : memref<8x2x128xf32, #tpu.memory_space<vmem>>, vector<1x2x128xf32>
    %114 = vector.shape_cast %113 : vector<1x2x128xf32> to vector<2x128xf32>
    %c0_32 = arith.constant 0 : index
    %c0_33 = arith.constant 0 : index
    %115 = vector.load %arg1[%c0_32, %c0_33] : memref<32x128xf32, #tpu.memory_space<vmem>>, vector<32x128xf32>
    %cst_34 = arith.constant dense<0.000000e+00> : vector<2x128xf32>
    %116 = tpu.matmul %111, %115, %cst_34 {dimension_numbers = #tpu.dot_dimension_numbers<[1], [0], [0], [1], [0, 0, 1, 1], [], []>} : vector<2x32xf32>, vector<32x128xf32>, vector<2x128xf32> -> vector<2x128xf32>
    %117 = arith.addf %114, %116 : vector<2x128xf32>
    %118 = vector.extract_strided_slice %117 {offsets = [0, 0], sizes = [2, 96], strides = [1, 1]} : vector<2x128xf32> to vector<2x96xf32>
    %119 = arith.negf %118 : vector<2x96xf32>
    %120 = math.exp %119 : vector<2x96xf32>
    %cst_35 = arith.constant 1.000000e+00 : f32
    %121 = vector.broadcast %cst_35 : f32 to vector<2x96xf32>
    %122 = arith.addf %121, %120 : vector<2x96xf32>
    %123 = arith.divf %121, %122 : vector<2x96xf32>
    %124 = vector.extract_strided_slice %117 {offsets = [0, 96], sizes = [2, 32], strides = [1, 1]} : vector<2x128xf32> to vector<2x32xf32>
    %125 = math.tanh %124 : vector<2x32xf32>
    %126 = vector.extract_strided_slice %123 {offsets = [0, 0], sizes = [2, 32], strides = [1, 1]} : vector<2x96xf32> to vector<2x32xf32>
    %127 = vector.extract_strided_slice %123 {offsets = [0, 32], sizes = [2, 32], strides = [1, 1]} : vector<2x96xf32> to vector<2x32xf32>
    %128 = vector.extract_strided_slice %123 {offsets = [0, 64], sizes = [2, 32], strides = [1, 1]} : vector<2x96xf32> to vector<2x32xf32>
    %129 = arith.mulf %127, %109 : vector<2x32xf32>
    %130 = arith.mulf %126, %125 : vector<2x32xf32>
    %131 = arith.addf %129, %130 : vector<2x32xf32>
    %132 = math.tanh %131 : vector<2x32xf32>
    %133 = arith.mulf %128, %132 : vector<2x32xf32>
    %c6_i32 = arith.constant 6 : i32
    %134 = arith.index_cast %c6_i32 : i32 to index
    %c0_36 = arith.constant 0 : index
    %c0_37 = arith.constant 0 : index
    %135 = vector.load %arg0[%134, %c0_36, %c0_37] : memref<8x2x128xf32, #tpu.memory_space<vmem>>, vector<1x2x128xf32>
    %136 = vector.shape_cast %135 : vector<1x2x128xf32> to vector<2x128xf32>
    %c0_38 = arith.constant 0 : index
    %c0_39 = arith.constant 0 : index
    %137 = vector.load %arg1[%c0_38, %c0_39] : memref<32x128xf32, #tpu.memory_space<vmem>>, vector<32x128xf32>
    %cst_40 = arith.constant dense<0.000000e+00> : vector<2x128xf32>
    %138 = tpu.matmul %133, %137, %cst_40 {dimension_numbers = #tpu.dot_dimension_numbers<[1], [0], [0], [1], [0, 0, 1, 1], [], []>} : vector<2x32xf32>, vector<32x128xf32>, vector<2x128xf32> -> vector<2x128xf32>
    %139 = arith.addf %136, %138 : vector<2x128xf32>
    %140 = vector.extract_strided_slice %139 {offsets = [0, 0], sizes = [2, 96], strides = [1, 1]} : vector<2x128xf32> to vector<2x96xf32>
    %141 = arith.negf %140 : vector<2x96xf32>
    %142 = math.exp %141 : vector<2x96xf32>
    %cst_41 = arith.constant 1.000000e+00 : f32
    %143 = vector.broadcast %cst_41 : f32 to vector<2x96xf32>
    %144 = arith.addf %143, %142 : vector<2x96xf32>
    %145 = arith.divf %143, %144 : vector<2x96xf32>
    %146 = vector.extract_strided_slice %139 {offsets = [0, 96], sizes = [2, 32], strides = [1, 1]} : vector<2x128xf32> to vector<2x32xf32>
    %147 = math.tanh %146 : vector<2x32xf32>
    %148 = vector.extract_strided_slice %145 {offsets = [0, 0], sizes = [2, 32], strides = [1, 1]} : vector<2x96xf32> to vector<2x32xf32>
    %149 = vector.extract_strided_slice %145 {offsets = [0, 32], sizes = [2, 32], strides = [1, 1]} : vector<2x96xf32> to vector<2x32xf32>
    %150 = vector.extract_strided_slice %145 {offsets = [0, 64], sizes = [2, 32], strides = [1, 1]} : vector<2x96xf32> to vector<2x32xf32>
    %151 = arith.mulf %149, %131 : vector<2x32xf32>
    %152 = arith.mulf %148, %147 : vector<2x32xf32>
    %153 = arith.addf %151, %152 : vector<2x32xf32>
    %154 = math.tanh %153 : vector<2x32xf32>
    %155 = arith.mulf %150, %154 : vector<2x32xf32>
    %c7_i32 = arith.constant 7 : i32
    %156 = arith.index_cast %c7_i32 : i32 to index
    %c0_42 = arith.constant 0 : index
    %c0_43 = arith.constant 0 : index
    %157 = vector.load %arg0[%156, %c0_42, %c0_43] : memref<8x2x128xf32, #tpu.memory_space<vmem>>, vector<1x2x128xf32>
    %158 = vector.shape_cast %157 : vector<1x2x128xf32> to vector<2x128xf32>
    %c0_44 = arith.constant 0 : index
    %c0_45 = arith.constant 0 : index
    %159 = vector.load %arg1[%c0_44, %c0_45] : memref<32x128xf32, #tpu.memory_space<vmem>>, vector<32x128xf32>
    %cst_46 = arith.constant dense<0.000000e+00> : vector<2x128xf32>
    %160 = tpu.matmul %155, %159, %cst_46 {dimension_numbers = #tpu.dot_dimension_numbers<[1], [0], [0], [1], [0, 0, 1, 1], [], []>} : vector<2x32xf32>, vector<32x128xf32>, vector<2x128xf32> -> vector<2x128xf32>
    %161 = arith.addf %158, %160 : vector<2x128xf32>
    %162 = vector.extract_strided_slice %161 {offsets = [0, 0], sizes = [2, 96], strides = [1, 1]} : vector<2x128xf32> to vector<2x96xf32>
    %163 = arith.negf %162 : vector<2x96xf32>
    %164 = math.exp %163 : vector<2x96xf32>
    %cst_47 = arith.constant 1.000000e+00 : f32
    %165 = vector.broadcast %cst_47 : f32 to vector<2x96xf32>
    %166 = arith.addf %165, %164 : vector<2x96xf32>
    %167 = arith.divf %165, %166 : vector<2x96xf32>
    %168 = vector.extract_strided_slice %161 {offsets = [0, 96], sizes = [2, 32], strides = [1, 1]} : vector<2x128xf32> to vector<2x32xf32>
    %169 = math.tanh %168 : vector<2x32xf32>
    %170 = vector.extract_strided_slice %167 {offsets = [0, 0], sizes = [2, 32], strides = [1, 1]} : vector<2x96xf32> to vector<2x32xf32>
    %171 = vector.extract_strided_slice %167 {offsets = [0, 32], sizes = [2, 32], strides = [1, 1]} : vector<2x96xf32> to vector<2x32xf32>
    %172 = vector.extract_strided_slice %167 {offsets = [0, 64], sizes = [2, 32], strides = [1, 1]} : vector<2x96xf32> to vector<2x32xf32>
    %173 = arith.mulf %171, %153 : vector<2x32xf32>
    %174 = arith.mulf %170, %169 : vector<2x32xf32>
    %175 = arith.addf %173, %174 : vector<2x32xf32>
    %176 = math.tanh %175 : vector<2x32xf32>
    %177 = arith.mulf %172, %176 : vector<2x32xf32>
    %c8_i32 = arith.constant 8 : i32
    %c0_48 = arith.constant 0 : index
    %c0_49 = arith.constant 0 : index
    %178 = vector.load %arg2[%c0_48, %c0_49] : memref<32x16xf32, #tpu.memory_space<vmem>>, vector<32x16xf32>
    %cst_50 = arith.constant dense<0.000000e+00> : vector<2x16xf32>
    %179 = tpu.matmul %177, %178, %cst_50 {dimension_numbers = #tpu.dot_dimension_numbers<[1], [0], [0], [1], [0, 0, 1, 1], [], []>} : vector<2x32xf32>, vector<32x16xf32>, vector<2x16xf32> -> vector<2x16xf32>
    %c0_51 = arith.constant 0 : index
    %c0_52 = arith.constant 0 : index
    %180 = vector.load %arg3[%c0_51, %c0_52] : memref<1x16xf32, #tpu.memory_space<vmem>>, vector<1x16xf32>
    %181 = vector.broadcast %180 : vector<1x16xf32> to vector<2x16xf32>
    %182 = arith.addf %179, %181 : vector<2x16xf32>
    %cst_53 = arith.constant 0.000000e+00 : f32
    %183 = vector.broadcast %cst_53 : f32 to vector<2x16xf32>
    %184 = arith.maximumf %182, %183 : vector<2x16xf32>
    %c0_54 = arith.constant 0 : index
    %c0_55 = arith.constant 0 : index
    %185 = vector.load %arg4[%c0_54, %c0_55] : memref<16x1xf32, #tpu.memory_space<vmem>>, vector<16x1xf32>
    %cst_56 = arith.constant dense<0.000000e+00> : vector<2x1xf32>
    %186 = tpu.matmul %184, %185, %cst_56 {dimension_numbers = #tpu.dot_dimension_numbers<[1], [0], [0], [1], [0, 0, 1, 1], [], []>} : vector<2x16xf32>, vector<16x1xf32>, vector<2x1xf32> -> vector<2x1xf32>
    %c0_57 = arith.constant 0 : index
    %c0_58 = arith.constant 0 : index
    %187 = vector.load %arg5[%c0_57, %c0_58] : memref<1x1xf32, #tpu.memory_space<vmem>>, vector<1x1xf32>
    %188 = vector.broadcast %187 : vector<1x1xf32> to vector<2x1xf32>
    %189 = arith.addf %186, %188 : vector<2x1xf32>
    %c0_59 = arith.constant 0 : index
    %c0_60 = arith.constant 0 : index
    %190 = vector.load %arg6[%c0_59, %c0_60] : memref<2x1xf32, #tpu.memory_space<vmem>>, vector<2x1xf32>
    tpu.vector_store %arg6[%c0_59, %c0_60], %189 {strides = array<i32>} : memref<2x1xf32, #tpu.memory_space<vmem>>, vector<2x1xf32>,
    return
  }
}

</mosaic_0001>

<llo_original>
// kernel: tpu_custom_call.1
$region0: #{tpu_custom_call.1}
  #allocation0 [shape = 'u32[]', space=smem, size = 0x4, offset = 0x4, fixed_abs, tag = 'smem constant byte address 0x4 - core index']
  #allocation1 [shape = 'u32[144,128]{1,0:T(1,128)}', space=vmem, size = 0x12000, scoped, tag = 'internal scratch']
  #allocation2 [shape = 'f32[1,1]{1,0:T(1,128)S(1)}', space=vmem, size = 0x200, scoped, tag = 'scoped memory for tpu_custom_call.1']
  %s0 = inlined_call_operand.vmem [shape: f32[8,2,128], index: 0, kind: input, shape index: {}]
  %s1 = inlined_call_operand.vmem [shape: f32[32,128], index: 1, kind: input, shape index: {}]
  %s2 = inlined_call_operand.vmem [shape: f32[32,16], index: 2, kind: input, shape index: {}]
  %s3 = inlined_call_operand.vmem [shape: f32[1,16], index: 3, kind: input, shape index: {}]
  %s4 = inlined_call_operand.vmem [shape: f32[16,1], index: 4, kind: input, shape index: {}]
  %s5 = inlined_call_operand.<no memory space> [shape: f32[1,1], index: 5, kind: input, shape index: {}]
  %s6 = inlined_call_operand.vmem [shape: f32[2,1], index: 6, kind: output, shape index: {}]
  %s7 = sld [smem:[#allocation0]]
  $region34: #{tpu_custom_call.1} parent=0
    _
  %s9 = ssub.s32 1, %s7
  %s10 = scalar_select 0, %s9, %s7
  %v11 = vstv %s5
  %12 = vst [vmem:[#allocation2] sm:$0x1] %v11
  // Predicated region
  $region2: #{tpu_custom_call.1} parent=0 // pred_check
    _
  $region3: #{tpu_custom_call.1} parent=0 // pred_check_branch
    %14 = sbr.rel (0) target = $region5
  $region4: #{tpu_custom_call.1} parent=0 // pred_region
    _
  $region5: #{tpu_custom_call.1} parent=0 // pred_fallthru
    _
  // Predicated region
  $region6: #{tpu_custom_call.1} parent=0 // pred_check
    _
  $region7: #{tpu_custom_call.1} parent=0 // pred_check_branch
    %16 = sbr.rel (0) target = $region9
  $region8: #{tpu_custom_call.1} parent=0 // pred_region
    _
  $region9: #{tpu_custom_call.1} parent=0 // pred_fallthru
    _
  // Predicated region
  $region10: #{tpu_custom_call.1} parent=0 // pred_check
    _
  $region11: #{tpu_custom_call.1} parent=0 // pred_check_branch
    %18 = sbr.rel (0) target = $region13
  $region12: #{tpu_custom_call.1} parent=0 // pred_region
    _
  $region13: #{tpu_custom_call.1} parent=0 // pred_fallthru
    _
  // Predicated region
  $region14: #{tpu_custom_call.1} parent=0 // pred_check
    _
  $region15: #{tpu_custom_call.1} parent=0 // pred_check_branch
    %20 = sbr.rel (0) target = $region17
  $region16: #{tpu_custom_call.1} parent=0 // pred_region
    _
  $region17: #{tpu_custom_call.1} parent=0 // pred_fallthru
    _
  // Predicated region
  $region18: #{tpu_custom_call.1} parent=0 // pred_check
    _
  $region19: #{tpu_custom_call.1} parent=0 // pred_check_branch
    %22 = sbr.rel (0) target = $region21
  $region20: #{tpu_custom_call.1} parent=0 // pred_region
    _
  $region21: #{tpu_custom_call.1} parent=0 // pred_fallthru
    _
  // Predicated region
  $region22: #{tpu_custom_call.1} parent=0 // pred_check
    _
  $region23: #{tpu_custom_call.1} parent=0 // pred_check_branch
    %24 = sbr.rel (0) target = $region25
  $region24: #{tpu_custom_call.1} parent=0 // pred_region
    _
  $region25: #{tpu_custom_call.1} parent=0 // pred_fallthru
    _
  %v25 = vld [vmem:[%s0] sm:$0x3]
  %v26 = vld [vmem:[%s1] sm:$0xff]
  %v27 = vld [vmem:[%s1 + $0x8] sm:$0xff]
  %v28 = vld [vmem:[%s1 + $0x10] sm:$0xff]
  %v29 = vld [vmem:[%s1 + $0x18] sm:$0xff]
  %vm30 = vcmask 261120
  %v32 = vsel %vm30, 0.0, 0
  %34 = vmatprep.subr.mxu0 0.0
  %35 = vmatpush1.msra.mxu0 %v26
  %36 = vmatprep.subr.mxu0 0.0
  %37 = vmatpush1.msra.mxu0 %v27
  %38 = vmatprep.subr.mxu0 0.0
  %39 = vmatpush1.msra.mxu0 %v28
  %40 = vmatprep.subr.mxu0 0.0
  %41 = vmatpush1.msra.mxu0 %v29
  %42 = vmatprep.subr.mxu0 0.0
  %43 = vmatpush1.msra.mxu0 0.0
  %44 = vmatprep.subr.mxu0 0.0
  %45 = vmatpush1.msra.mxu0 0.0
  %46 = vmatprep.subr.mxu0 0.0
  %47 = vmatpush1.msra.mxu0 0.0
  %48 = vmatprep.subr.mxu0 0.0
  %49 = vmatpush1.msra.mxu0 0.0
  %50 = vmatprep.subr.mxu0 0.0
  %51 = vmatpush1.msra.mxu0 0.0
  %52 = vmatprep.subr.mxu0 0.0
  %53 = vmatpush1.msra.mxu0 0.0
  %54 = vmatprep.subr.mxu0 0.0
  %55 = vmatpush1.msra.mxu0 0.0
  %56 = vmatprep.subr.mxu0 0.0
  %57 = vmatpush1.msra.mxu0 0.0
  %58 = vmatprep.subr.mxu0 0.0
  %59 = vmatpush1.msra.mxu0 0.0
  %60 = vmatprep.subr.mxu0 0.0
  %61 = vmatpush1.msra.mxu0 0.0
  %62 = vmatprep.subr.mxu0 0.0
  %63 = vmatpush1.msra.mxu0 0.0
  %64 = vmatprep.subr.mxu0 0.0
  %65 = vmatpush1.msra.mxu0 0.0
  %66 = vmatprep.subr.mxu0 0.0
  %67 = vmatpush1.msra.mxu0 0.0
  %68 = vmatprep.subr.mxu0 0.0
  %69 = vmatpush1.msra.mxu0 0.0
  %70 = vmatprep.subr.mxu0 0.0
  %71 = vmatpush1.msra.mxu0 0.0
  %72 = vmatprep.subr.mxu0 0.0
  %73 = vmatpush1.msra.mxu0 0.0
  %74 = vmatprep.subr.mxu0 0.0
  %75 = vmatpush1.msra.mxu0 0.0
  %76 = vmatprep.subr.mxu0 0.0
  %77 = vmatpush1.msra.mxu0 0.0
  %78 = vmatprep.subr.mxu0 0.0
  %79 = vmatpush1.msra.mxu0 0.0
  %80 = vmatprep.subr.mxu0 0.0
  %81 = vmatpush1.msra.mxu0 0.0
  %82 = vmatprep.subr.mxu0 0.0
  %83 = vmatpush1.msra.mxu0 0.0
  %84 = vmatprep.subr.mxu0 0.0
  %85 = vmatpush1.msra.mxu0 0.0
  %86 = vmatprep.subr.mxu0 0.0
  %87 = vmatpush1.msra.mxu0 0.0
  %88 = vmatprep.subr.mxu0 0.0
  %89 = vmatpush1.msra.mxu0 0.0
  %90 = vmatprep.subr.mxu0 0.0
  %91 = vmatpush1.msra.mxu0 0.0
  %92 = vmatprep.subr.mxu0 0.0
  %93 = vmatpush1.msra.mxu0 0.0
  %94 = vmatprep.subr.mxu0 0.0
  %95 = vmatpush1.msra.mxu0 0.0
  %96 = vmatprep.subr.mxu0 0.0
  %97 = vmatpush1.msra.mxu0 0.0
  %98 = vmatprep.mubr.f32.mxu0 0.0
  %99 = vmatmul.mubr.f32.gmra.mrb[0].mxu0 %v32
  %v100 = vpop.f32.mrb[0].mxu0
  %v101 = vadd.f32 0.0, %v100
  %v102 = vpop.f32.mrb[0].mxu0
  %103 = vdwg.mxu0
  %v104 = vadd.f32 %v25, %v101
  %v105 = vxor.u32 %v104, 2147483648
  %v106 = vmul.f32 %v105, 1.442695
  %v107 = vpow.pop %v106
  %v108 = vadd.f32 %v107, 1.0
  %v109 = vrcp.pop %v108
  %v110 = vmul.f32 1.0, %v109
  %v111 = vtanh.pop %v104
  %v112 = vmul.f32 %v110, 0.0
  %114 = vrot.lane.b32.xlu0 %v111, 32
  %v115 = vpop.permute.xlu0 %114
  %v117 = vmul.f32 %v110, %v115
  %119 = vrot.lane.b32.xlu0 %v117, 32
  %v120 = vpop.permute.xlu0 %119
  %v122 = vadd.f32 %v112, %v120
  %v123 = vtanh.pop %v122
  %125 = vrot.lane.b32.xlu0 %v123, 32
  %v126 = vpop.permute.xlu0 %125
  %v128 = vmul.f32 %v110, %v126
  %s129 = scalar_lea.vmem %s0, 2
  %v130 = vld [vmem:[%s129] sm:$0x3]
  %132 = vrot.lane.b32.xlu0 %v128, 64
  %v133 = vpop.permute.xlu0 %132
  %v134 = vsel %vm30, %v133, 0
  %136 = vmatprep.subr.mxu0 0.0
  %137 = vmatpush1.msra.mxu0 %v26
  %138 = vmatprep.subr.mxu0 0.0
  %139 = vmatpush1.msra.mxu0 %v27
  %140 = vmatprep.subr.mxu0 0.0
  %141 = vmatpush1.msra.mxu0 %v28
  %142 = vmatprep.subr.mxu0 0.0
  %143 = vmatpush1.msra.mxu0 %v29
  %144 = vmatprep.subr.mxu0 0.0
  %145 = vmatpush1.msra.mxu0 0.0
  %146 = vmatprep.subr.mxu0 0.0
  %147 = vmatpush1.msra.mxu0 0.0
  %148 = vmatprep.subr.mxu0 0.0
  %149 = vmatpush1.msra.mxu0 0.0
  %150 = vmatprep.subr.mxu0 0.0
  %151 = vmatpush1.msra.mxu0 0.0
  %152 = vmatprep.subr.mxu0 0.0
  %153 = vmatpush1.msra.mxu0 0.0
  %154 = vmatprep.subr.mxu0 0.0
  %155 = vmatpush1.msra.mxu0 0.0
  %156 = vmatprep.subr.mxu0 0.0
  %157 = vmatpush1.msra.mxu0 0.0
  %158 = vmatprep.subr.mxu0 0.0
  %159 = vmatpush1.msra.mxu0 0.0
  %160 = vmatprep.subr.mxu0 0.0
  %161 = vmatpush1.msra.mxu0 0.0
  %162 = vmatprep.subr.mxu0 0.0
  %163 = vmatpush1.msra.mxu0 0.0
  %164 = vmatprep.subr.mxu0 0.0
  %165 = vmatpush1.msra.mxu0 0.0
  %166 = vmatprep.subr.mxu0 0.0
  %167 = vmatpush1.msra.mxu0 0.0
  %168 = vmatprep.subr.mxu0 0.0
  %169 = vmatpush1.msra.mxu0 0.0
  %170 = vmatprep.subr.mxu0 0.0
  %171 = vmatpush1.msra.mxu0 0.0
  %172 = vmatprep.subr.mxu0 0.0
  %173 = vmatpush1.msra.mxu0 0.0
  %174 = vmatprep.subr.mxu0 0.0
  %175 = vmatpush1.msra.mxu0 0.0
  %176 = vmatprep.subr.mxu0 0.0
  %177 = vmatpush1.msra.mxu0 0.0
  %178 = vmatprep.subr.mxu0 0.0
  %179 = vmatpush1.msra.mxu0 0.0
  %180 = vmatprep.subr.mxu0 0.0
  %181 = vmatpush1.msra.mxu0 0.0
  %182 = vmatprep.subr.mxu0 0.0
  %183 = vmatpush1.msra.mxu0 0.0
  %184 = vmatprep.subr.mxu0 0.0
  %185 = vmatpush1.msra.mxu0 0.0
  %186 = vmatprep.subr.mxu0 0.0
  %187 = vmatpush1.msra.mxu0 0.0
  %188 = vmatprep.subr.mxu0 0.0
  %189 = vmatpush1.msra.mxu0 0.0
  %190 = vmatprep.subr.mxu0 0.0
  %191 = vmatpush1.msra.mxu0 0.0
  %192 = vmatprep.subr.mxu0 0.0
  %193 = vmatpush1.msra.mxu0 0.0
  %194 = vmatprep.subr.mxu0 0.0
  %195 = vmatpush1.msra.mxu0 0.0
  %196 = vmatprep.subr.mxu0 0.0
  %197 = vmatpush1.msra.mxu0 0.0
  %198 = vmatprep.subr.mxu0 0.0
  %199 = vmatpush1.msra.mxu0 0.0
  %200 = vmatprep.mubr.f32.mxu0 0.0
  %201 = vmatmul.mubr.f32.gmra.mrb[0].mxu0 %v134
  %v202 = vpop.f32.mrb[0].mxu0
  %v203 = vadd.f32 0.0, %v202
  %v204 = vpop.f32.mrb[0].mxu0
  %205 = vdwg.mxu0
  %v206 = vadd.f32 %v130, %v203
  %v207 = vxor.u32 %v206, 2147483648
  %v208 = vmul.f32 %v207, 1.442695
  %v209 = vpow.pop %v208
  %v210 = vadd.f32 %v209, 1.0
  %v211 = vrcp.pop %v210
  %v212 = vmul.f32 1.0, %v211
  %v213 = vtanh.pop %v206
  %v214 = vmul.f32 %v212, %v122
  %216 = vrot.lane.b32.xlu0 %v213, 32
  %v217 = vpop.permute.xlu0 %216
  %v219 = vmul.f32 %v212, %v217
  %221 = vrot.lane.b32.xlu0 %v219, 32
  %v222 = vpop.permute.xlu0 %221
  %v224 = vadd.f32 %v214, %v222
  %v225 = vtanh.pop %v224
  %227 = vrot.lane.b32.xlu0 %v225, 32
  %v228 = vpop.permute.xlu0 %227
  %v230 = vmul.f32 %v212, %v228
  %s231 = scalar_lea.vmem %s0, 4
  %v232 = vld [vmem:[%s231] sm:$0x3]
  %234 = vrot.lane.b32.xlu0 %v230, 64
  %v235 = vpop.permute.xlu0 %234
  %v236 = vsel %vm30, %v235, 0
  %238 = vmatprep.subr.mxu0 0.0
  %239 = vmatpush1.msra.mxu0 %v26
  %240 = vmatprep.subr.mxu0 0.0
  %241 = vmatpush1.msra.mxu0 %v27
  %242 = vmatprep.subr.mxu0 0.0
  %243 = vmatpush1.msra.mxu0 %v28
  %244 = vmatprep.subr.mxu0 0.0
  %245 = vmatpush1.msra.mxu0 %v29
  %246 = vmatprep.subr.mxu0 0.0
  %247 = vmatpush1.msra.mxu0 0.0
  %248 = vmatprep.subr.mxu0 0.0
  %249 = vmatpush1.msra.mxu0 0.0
  %250 = vmatprep.subr.mxu0 0.0
  %251 = vmatpush1.msra.mxu0 0.0
  %252 = vmatprep.subr.mxu0 0.0
  %253 = vmatpush1.msra.mxu0 0.0
  %254 = vmatprep.subr.mxu0 0.0
  %255 = vmatpush1.msra.mxu0 0.0
  %256 = vmatprep.subr.mxu0 0.0
  %257 = vmatpush1.msra.mxu0 0.0
  %258 = vmatprep.subr.mxu0 0.0
  %259 = vmatpush1.msra.mxu0 0.0
  %260 = vmatprep.subr.mxu0 0.0
  %261 = vmatpush1.msra.mxu0 0.0
  %262 = vmatprep.subr.mxu0 0.0
  %263 = vmatpush1.msra.mxu0 0.0
  %264 = vmatprep.subr.mxu0 0.0
  %265 = vmatpush1.msra.mxu0 0.0
  %266 = vmatprep.subr.mxu0 0.0
  %267 = vmatpush1.msra.mxu0 0.0
  %268 = vmatprep.subr.mxu0 0.0
  %269 = vmatpush1.msra.mxu0 0.0
  %270 = vmatprep.subr.mxu0 0.0
  %271 = vmatpush1.msra.mxu0 0.0
  %272 = vmatprep.subr.mxu0 0.0
  %273 = vmatpush1.msra.mxu0 0.0
  %274 = vmatprep.subr.mxu0 0.0
  %275 = vmatpush1.msra.mxu0 0.0
  %276 = vmatprep.subr.mxu0 0.0
  %277 = vmatpush1.msra.mxu0 0.0
  %278 = vmatprep.subr.mxu0 0.0
  %279 = vmatpush1.msra.mxu0 0.0
  %280 = vmatprep.subr.mxu0 0.0
  %281 = vmatpush1.msra.mxu0 0.0
  %282 = vmatprep.subr.mxu0 0.0
  %283 = vmatpush1.msra.mxu0 0.0
  %284 = vmatprep.subr.mxu0 0.0
  %285 = vmatpush1.msra.mxu0 0.0
  %286 = vmatprep.subr.mxu0 0.0
  %287 = vmatpush1.msra.mxu0 0.0
  %288 = vmatprep.subr.mxu0 0.0
  %289 = vmatpush1.msra.mxu0 0.0
  %290 = vmatprep.subr.mxu0 0.0
  %291 = vmatpush1.msra.mxu0 0.0
  %292 = vmatprep.subr.mxu0 0.0
  %293 = vmatpush1.msra.mxu0 0.0
  %294 = vmatprep.subr.mxu0 0.0
  %295 = vmatpush1.msra.mxu0 0.0
  %296 = vmatprep.subr.mxu0 0.0
  %297 = vmatpush1.msra.mxu0 0.0
  %298 = vmatprep.subr.mxu0 0.0
  %299 = vmatpush1.msra.mxu0 0.0
  %300 = vmatprep.subr.mxu0 0.0
  %301 = vmatpush1.msra.mxu0 0.0
  %302 = vmatprep.mubr.f32.mxu0 0.0
  %303 = vmatmul.mubr.f32.gmra.mrb[0].mxu0 %v236
  %v304 = vpop.f32.mrb[0].mxu0
  %v305 = vadd.f32 0.0, %v304
  %v306 = vpop.f32.mrb[0].mxu0
  %307 = vdwg.mxu0
  %v308 = vadd.f32 %v232, %v305
  %v309 = vxor.u32 %v308, 2147483648
  %v310 = vmul.f32 %v309, 1.442695
  %v311 = vpow.pop %v310
  %v312 = vadd.f32 %v311, 1.0
  %v313 = vrcp.pop %v312
  %v314 = vmul.f32 1.0, %v313
  %v315 = vtanh.pop %v308
  %v316 = vmul.f32 %v314, %v224
  %318 = vrot.lane.b32.xlu0 %v315, 32
  %v319 = vpop.permute.xlu0 %318
  %v321 = vmul.f32 %v314, %v319
  %323 = vrot.lane.b32.xlu0 %v321, 32
  %v324 = vpop.permute.xlu0 %323
  %v326 = vadd.f32 %v316, %v324
  %v327 = vtanh.pop %v326
  %329 = vrot.lane.b32.xlu0 %v327, 32
  %v330 = vpop.permute.xlu0 %329
  %v332 = vmul.f32 %v314, %v330
  %s333 = scalar_lea.vmem %s0, 6
  %v334 = vld [vmem:[%s333] sm:$0x3]
  %336 = vrot.lane.b32.xlu0 %v332, 64
  %v337 = vpop.permute.xlu0 %336
  %v338 = vsel %vm30, %v337, 0
  %340 = vmatprep.subr.mxu0 0.0
  %341 = vmatpush1.msra.mxu0 %v26
  %342 = vmatprep.subr.mxu0 0.0
  %343 = vmatpush1.msra.mxu0 %v27
  %344 = vmatprep.subr.mxu0 0.0
  %345 = vmatpush1.msra.mxu0 %v28
  %346 = vmatprep.subr.mxu0 0.0
  %347 = vmatpush1.msra.mxu0 %v29
  %348 = vmatprep.subr.mxu0 0.0
  %349 = vmatpush1.msra.mxu0 0.0
  %350 = vmatprep.subr.mxu0 0.0
  %351 = vmatpush1.msra.mxu0 0.0
  %352 = vmatprep.subr.mxu0 0.0
  %353 = vmatpush1.msra.mxu0 0.0
  %354 = vmatprep.subr.mxu0 0.0
  %355 = vmatpush1.msra.mxu0 0.0
  %356 = vmatprep.subr.mxu0 0.0
  %357 = vmatpush1.msra.mxu0 0.0
  %358 = vmatprep.subr.mxu0 0.0
  %359 = vmatpush1.msra.mxu0 0.0
  %360 = vmatprep.subr.mxu0 0.0
  %361 = vmatpush1.msra.mxu0 0.0
  %362 = vmatprep.subr.mxu0 0.0
  %363 = vmatpush1.msra.mxu0 0.0
  %364 = vmatprep.subr.mxu0 0.0
  %365 = vmatpush1.msra.mxu0 0.0
  %366 = vmatprep.subr.mxu0 0.0
  %367 = vmatpush1.msra.mxu0 0.0
  %368 = vmatprep.subr.mxu0 0.0
  %369 = vmatpush1.msra.mxu0 0.0
  %370 = vmatprep.subr.mxu0 0.0
  %371 = vmatpush1.msra.mxu0 0.0
  %372 = vmatprep.subr.mxu0 0.0
  %373 = vmatpush1.msra.mxu0 0.0
  %374 = vmatprep.subr.mxu0 0.0
  %375 = vmatpush1.msra.mxu0 0.0
  %376 = vmatprep.subr.mxu0 0.0
  %377 = vmatpush1.msra.mxu0 0.0
  %378 = vmatprep.subr.mxu0 0.0
  %379 = vmatpush1.msra.mxu0 0.0
  %380 = vmatprep.subr.mxu0 0.0
  %381 = vmatpush1.msra.mxu0 0.0
  %382 = vmatprep.subr.mxu0 0.0
  %383 = vmatpush1.msra.mxu0 0.0
  %384 = vmatprep.subr.mxu0 0.0
  %385 = vmatpush1.msra.mxu0 0.0
  %386 = vmatprep.subr.mxu0 0.0
  %387 = vmatpush1.msra.mxu0 0.0
  %388 = vmatprep.subr.mxu0 0.0
  %389 = vmatpush1.msra.mxu0 0.0
  %390 = vmatprep.subr.mxu0 0.0
  %391 = vmatpush1.msra.mxu0 0.0
  %392 = vmatprep.subr.mxu0 0.0
  %393 = vmatpush1.msra.mxu0 0.0
  %394 = vmatprep.subr.mxu0 0.0
  %395 = vmatpush1.msra.mxu0 0.0
  %396 = vmatprep.subr.mxu0 0.0
  %397 = vmatpush1.msra.mxu0 0.0
  %398 = vmatprep.subr.mxu0 0.0
  %399 = vmatpush1.msra.mxu0 0.0
  %400 = vmatprep.subr.mxu0 0.0
  %401 = vmatpush1.msra.mxu0 0.0
  %402 = vmatprep.subr.mxu0 0.0
  %403 = vmatpush1.msra.mxu0 0.0
  %404 = vmatprep.mubr.f32.mxu0 0.0
  %405 = vmatmul.mubr.f32.gmra.mrb[0].mxu0 %v338
  %v406 = vpop.f32.mrb[0].mxu0
  %v407 = vadd.f32 0.0, %v406
  %v408 = vpop.f32.mrb[0].mxu0
  %409 = vdwg.mxu0
  %v410 = vadd.f32 %v334, %v407
  %v411 = vxor.u32 %v410, 2147483648
  %v412 = vmul.f32 %v411, 1.442695
  %v413 = vpow.pop %v412
  %v414 = vadd.f32 %v413, 1.0
  %v415 = vrcp.pop %v414
  %v416 = vmul.f32 1.0, %v415
  %v417 = vtanh.pop %v410
  %v418 = vmul.f32 %v416, %v326
  %420 = vrot.lane.b32.xlu0 %v417, 32
  %v421 = vpop.permute.xlu0 %420
  %v423 = vmul.f32 %v416, %v421
  %425 = vrot.lane.b32.xlu0 %v423, 32
  %v426 = vpop.permute.xlu0 %425
  %v428 = vadd.f32 %v418, %v426
  %v429 = vtanh.pop %v428
  %431 = vrot.lane.b32.xlu0 %v429, 32
  %v432 = vpop.permute.xlu0 %431
  %v434 = vmul.f32 %v416, %v432
  %s435 = scalar_lea.vmem %s0, 8
  %v436 = vld [vmem:[%s435] sm:$0x3]
  %438 = vrot.lane.b32.xlu0 %v434, 64
  %v439 = vpop.permute.xlu0 %438
  %v440 = vsel %vm30, %v439, 0
  %442 = vmatprep.subr.mxu0 0.0
  %443 = vmatpush1.msra.mxu0 %v26
  %444 = vmatprep.subr.mxu0 0.0
  %445 = vmatpush1.msra.mxu0 %v27
  %446 = vmatprep.subr.mxu0 0.0
  %447 = vmatpush1.msra.mxu0 %v28
  %448 = vmatprep.subr.mxu0 0.0
  %449 = vmatpush1.msra.mxu0 %v29
  %450 = vmatprep.subr.mxu0 0.0
  %451 = vmatpush1.msra.mxu0 0.0
  %452 = vmatprep.subr.mxu0 0.0
  %453 = vmatpush1.msra.mxu0 0.0
  %454 = vmatprep.subr.mxu0 0.0
  %455 = vmatpush1.msra.mxu0 0.0
  %456 = vmatprep.subr.mxu0 0.0
  %457 = vmatpush1.msra.mxu0 0.0
  %458 = vmatprep.subr.mxu0 0.0
  %459 = vmatpush1.msra.mxu0 0.0
  %460 = vmatprep.subr.mxu0 0.0
  %461 = vmatpush1.msra.mxu0 0.0
  %462 = vmatprep.subr.mxu0 0.0
  %463 = vmatpush1.msra.mxu0 0.0
  %464 = vmatprep.subr.mxu0 0.0
  %465 = vmatpush1.msra.mxu0 0.0
  %466 = vmatprep.subr.mxu0 0.0
  %467 = vmatpush1.msra.mxu0 0.0
  %468 = vmatprep.subr.mxu0 0.0
  %469 = vmatpush1.msra.mxu0 0.0
  %470 = vmatprep.subr.mxu0 0.0
  %471 = vmatpush1.msra.mxu0 0.0
  %472 = vmatprep.subr.mxu0 0.0
  %473 = vmatpush1.msra.mxu0 0.0
  %474 = vmatprep.subr.mxu0 0.0
  %475 = vmatpush1.msra.mxu0 0.0
  %476 = vmatprep.subr.mxu0 0.0
  %477 = vmatpush1.msra.mxu0 0.0
  %478 = vmatprep.subr.mxu0 0.0
  %479 = vmatpush1.msra.mxu0 0.0
  %480 = vmatprep.subr.mxu0 0.0
  %481 = vmatpush1.msra.mxu0 0.0
  %482 = vmatprep.subr.mxu0 0.0
  %483 = vmatpush1.msra.mxu0 0.0
  %484 = vmatprep.subr.mxu0 0.0
  %485 = vmatpush1.msra.mxu0 0.0
  %486 = vmatprep.subr.mxu0 0.0
  %487 = vmatpush1.msra.mxu0 0.0
  %488 = vmatprep.subr.mxu0 0.0
  %489 = vmatpush1.msra.mxu0 0.0
  %490 = vmatprep.subr.mxu0 0.0
  %491 = vmatpush1.msra.mxu0 0.0
  %492 = vmatprep.subr.mxu0 0.0
  %493 = vmatpush1.msra.mxu0 0.0
  %494 = vmatprep.subr.mxu0 0.0
  %495 = vmatpush1.msra.mxu0 0.0
  %496 = vmatprep.subr.mxu0 0.0
  %497 = vmatpush1.msra.mxu0 0.0
  %498 = vmatprep.subr.mxu0 0.0
  %499 = vmatpush1.msra.mxu0 0.0
  %500 = vmatprep.subr.mxu0 0.0
  %501 = vmatpush1.msra.mxu0 0.0
  %502 = vmatprep.subr.mxu0 0.0
  %503 = vmatpush1.msra.mxu0 0.0
  %504 = vmatprep.subr.mxu0 0.0
  %505 = vmatpush1.msra.mxu0 0.0
  %506 = vmatprep.mubr.f32.mxu0 0.0
  %507 = vmatmul.mubr.f32.gmra.mrb[0].mxu0 %v440
  %v508 = vpop.f32.mrb[0].mxu0
  %v509 = vadd.f32 0.0, %v508
  %v510 = vpop.f32.mrb[0].mxu0
  %511 = vdwg.mxu0
  %v512 = vadd.f32 %v436, %v509
  %v513 = vxor.u32 %v512, 2147483648
  %v514 = vmul.f32 %v513, 1.442695
  %v515 = vpow.pop %v514
  %v516 = vadd.f32 %v515, 1.0
  %v517 = vrcp.pop %v516
  %v518 = vmul.f32 1.0, %v517
  %v519 = vtanh.pop %v512
  %v520 = vmul.f32 %v518, %v428
  %522 = vrot.lane.b32.xlu0 %v519, 32
  %v523 = vpop.permute.xlu0 %522
  %v525 = vmul.f32 %v518, %v523
  %527 = vrot.lane.b32.xlu0 %v525, 32
  %v528 = vpop.permute.xlu0 %527
  %v530 = vadd.f32 %v520, %v528
  %v531 = vtanh.pop %v530
  %533 = vrot.lane.b32.xlu0 %v531, 32
  %v534 = vpop.permute.xlu0 %533
  %v536 = vmul.f32 %v518, %v534
  %s537 = scalar_lea.vmem %s0, 10
  %v538 = vld [vmem:[%s537] sm:$0x3]
  %540 = vrot.lane.b32.xlu0 %v536, 64
  %v541 = vpop.permute.xlu0 %540
  %v542 = vsel %vm30, %v541, 0
  %544 = vmatprep.subr.mxu0 0.0
  %545 = vmatpush1.msra.mxu0 %v26
  %546 = vmatprep.subr.mxu0 0.0
  %547 = vmatpush1.msra.mxu0 %v27
  %548 = vmatprep.subr.mxu0 0.0
  %549 = vmatpush1.msra.mxu0 %v28
  %550 = vmatprep.subr.mxu0 0.0
  %551 = vmatpush1.msra.mxu0 %v29
  %552 = vmatprep.subr.mxu0 0.0
  %553 = vmatpush1.msra.mxu0 0.0
  %554 = vmatprep.subr.mxu0 0.0
  %555 = vmatpush1.msra.mxu0 0.0
  %556 = vmatprep.subr.mxu0 0.0
  %557 = vmatpush1.msra.mxu0 0.0
  %558 = vmatprep.subr.mxu0 0.0
  %559 = vmatpush1.msra.mxu0 0.0
  %560 = vmatprep.subr.mxu0 0.0
  %561 = vmatpush1.msra.mxu0 0.0
  %562 = vmatprep.subr.mxu0 0.0
  %563 = vmatpush1.msra.mxu0 0.0
  %564 = vmatprep.subr.mxu0 0.0
  %565 = vmatpush1.msra.mxu0 0.0
  %566 = vmatprep.subr.mxu0 0.0
  %567 = vmatpush1.msra.mxu0 0.0
  %568 = vmatprep.subr.mxu0 0.0
  %569 = vmatpush1.msra.mxu0 0.0
  %570 = vmatprep.subr.mxu0 0.0
  %571 = vmatpush1.msra.mxu0 0.0
  %572 = vmatprep.subr.mxu0 0.0
  %573 = vmatpush1.msra.mxu0 0.0
  %574 = vmatprep.subr.mxu0 0.0
  %575 = vmatpush1.msra.mxu0 0.0
  %576 = vmatprep.subr.mxu0 0.0
  %577 = vmatpush1.msra.mxu0 0.0
  %578 = vmatprep.subr.mxu0 0.0
  %579 = vmatpush1.msra.mxu0 0.0
  %580 = vmatprep.subr.mxu0 0.0
  %581 = vmatpush1.msra.mxu0 0.0
  %582 = vmatprep.subr.mxu0 0.0
  %583 = vmatpush1.msra.mxu0 0.0
  %584 = vmatprep.subr.mxu0 0.0
  %585 = vmatpush1.msra.mxu0 0.0
  %586 = vmatprep.subr.mxu0 0.0
  %587 = vmatpush1.msra.mxu0 0.0
  %588 = vmatprep.subr.mxu0 0.0
  %589 = vmatpush1.msra.mxu0 0.0
  %590 = vmatprep.subr.mxu0 0.0
  %591 = vmatpush1.msra.mxu0 0.0
  %592 = vmatprep.subr.mxu0 0.0
  %593 = vmatpush1.msra.mxu0 0.0
  %594 = vmatprep.subr.mxu0 0.0
  %595 = vmatpush1.msra.mxu0 0.0
  %596 = vmatprep.subr.mxu0 0.0
  %597 = vmatpush1.msra.mxu0 0.0
  %598 = vmatprep.subr.mxu0 0.0
  %599 = vmatpush1.msra.mxu0 0.0
  %600 = vmatprep.subr.mxu0 0.0
  %601 = vmatpush1.msra.mxu0 0.0
  %602 = vmatprep.subr.mxu0 0.0
  %603 = vmatpush1.msra.mxu0 0.0
  %604 = vmatprep.subr.mxu0 0.0
  %605 = vmatpush1.msra.mxu0 0.0
  %606 = vmatprep.subr.mxu0 0.0
  %607 = vmatpush1.msra.mxu0 0.0
  %608 = vmatprep.mubr.f32.mxu0 0.0
  %609 = vmatmul.mubr.f32.gmra.mrb[0].mxu0 %v542
  %v610 = vpop.f32.mrb[0].mxu0
  %v611 = vadd.f32 0.0, %v610
  %v612 = vpop.f32.mrb[0].mxu0
  %613 = vdwg.mxu0
  %v614 = vadd.f32 %v538, %v611
  %v615 = vxor.u32 %v614, 2147483648
  %v616 = vmul.f32 %v615, 1.442695
  %v617 = vpow.pop %v616
  %v618 = vadd.f32 %v617, 1.0
  %v619 = vrcp.pop %v618
  %v620 = vmul.f32 1.0, %v619
  %v621 = vtanh.pop %v614
  %v622 = vmul.f32 %v620, %v530
  %624 = vrot.lane.b32.xlu0 %v621, 32
  %v625 = vpop.permute.xlu0 %624
  %v627 = vmul.f32 %v620, %v625
  %629 = vrot.lane.b32.xlu0 %v627, 32
  %v630 = vpop.permute.xlu0 %629
  %v632 = vadd.f32 %v622, %v630
  %v633 = vtanh.pop %v632
  %635 = vrot.lane.b32.xlu0 %v633, 32
  %v636 = vpop.permute.xlu0 %635
  %v638 = vmul.f32 %v620, %v636
  %s639 = scalar_lea.vmem %s0, 12
  %v640 = vld [vmem:[%s639] sm:$0x3]
  %642 = vrot.lane.b32.xlu0 %v638, 64
  %v643 = vpop.permute.xlu0 %642
  %v644 = vsel %vm30, %v643, 0
  %646 = vmatprep.subr.mxu0 0.0
  %647 = vmatpush1.msra.mxu0 %v26
  %648 = vmatprep.subr.mxu0 0.0
  %649 = vmatpush1.msra.mxu0 %v27
  %650 = vmatprep.subr.mxu0 0.0
  %651 = vmatpush1.msra.mxu0 %v28
  %652 = vmatprep.subr.mxu0 0.0
  %653 = vmatpush1.msra.mxu0 %v29
  %654 = vmatprep.subr.mxu0 0.0
  %655 = vmatpush1.msra.mxu0 0.0
  %656 = vmatprep.subr.mxu0 0.0
  %657 = vmatpush1.msra.mxu0 0.0
  %658 = vmatprep.subr.mxu0 0.0
  %659 = vmatpush1.msra.mxu0 0.0
  %660 = vmatprep.subr.mxu0 0.0
  %661 = vmatpush1.msra.mxu0 0.0
  %662 = vmatprep.subr.mxu0 0.0
  %663 = vmatpush1.msra.mxu0 0.0
  %664 = vmatprep.subr.mxu0 0.0
  %665 = vmatpush1.msra.mxu0 0.0
  %666 = vmatprep.subr.mxu0 0.0
  %667 = vmatpush1.msra.mxu0 0.0
  %668 = vmatprep.subr.mxu0 0.0
  %669 = vmatpush1.msra.mxu0 0.0
  %670 = vmatprep.subr.mxu0 0.0
  %671 = vmatpush1.msra.mxu0 0.0
  %672 = vmatprep.subr.mxu0 0.0
  %673 = vmatpush1.msra.mxu0 0.0
  %674 = vmatprep.subr.mxu0 0.0
  %675 = vmatpush1.msra.mxu0 0.0
  %676 = vmatprep.subr.mxu0 0.0
  %677 = vmatpush1.msra.mxu0 0.0
  %678 = vmatprep.subr.mxu0 0.0
  %679 = vmatpush1.msra.mxu0 0.0
  %680 = vmatprep.subr.mxu0 0.0
  %681 = vmatpush1.msra.mxu0 0.0
  %682 = vmatprep.subr.mxu0 0.0
  %683 = vmatpush1.msra.mxu0 0.0
  %684 = vmatprep.subr.mxu0 0.0
  %685 = vmatpush1.msra.mxu0 0.0
  %686 = vmatprep.subr.mxu0 0.0
  %687 = vmatpush1.msra.mxu0 0.0
  %688 = vmatprep.subr.mxu0 0.0
  %689 = vmatpush1.msra.mxu0 0.0
  %690 = vmatprep.subr.mxu0 0.0
  %691 = vmatpush1.msra.mxu0 0.0
  %692 = vmatprep.subr.mxu0 0.0
  %693 = vmatpush1.msra.mxu0 0.0
  %694 = vmatprep.subr.mxu0 0.0
  %695 = vmatpush1.msra.mxu0 0.0
  %696 = vmatprep.subr.mxu0 0.0
  %697 = vmatpush1.msra.mxu0 0.0
  %698 = vmatprep.subr.mxu0 0.0
  %699 = vmatpush1.msra.mxu0 0.0
  %700 = vmatprep.subr.mxu0 0.0
  %701 = vmatpush1.msra.mxu0 0.0
  %702 = vmatprep.subr.mxu0 0.0
  %703 = vmatpush1.msra.mxu0 0.0
  %704 = vmatprep.subr.mxu0 0.0
  %705 = vmatpush1.msra.mxu0 0.0
  %706 = vmatprep.subr.mxu0 0.0
  %707 = vmatpush1.msra.mxu0 0.0
  %708 = vmatprep.subr.mxu0 0.0
  %709 = vmatpush1.msra.mxu0 0.0
  %710 = vmatprep.mubr.f32.mxu0 0.0
  %711 = vmatmul.mubr.f32.gmra.mrb[0].mxu0 %v644
  %v712 = vpop.f32.mrb[0].mxu0
  %v713 = vadd.f32 0.0, %v712
  %v714 = vpop.f32.mrb[0].mxu0
  %715 = vdwg.mxu0
  %v716 = vadd.f32 %v640, %v713
  %v717 = vxor.u32 %v716, 2147483648
  %v718 = vmul.f32 %v717, 1.442695
  %v719 = vpow.pop %v718
  %v720 = vadd.f32 %v719, 1.0
  %v721 = vrcp.pop %v720
  %v722 = vmul.f32 1.0, %v721
  %v723 = vtanh.pop %v716
  %v724 = vmul.f32 %v722, %v632
  %726 = vrot.lane.b32.xlu0 %v723, 32
  %v727 = vpop.permute.xlu0 %726
  %v729 = vmul.f32 %v722, %v727
  %731 = vrot.lane.b32.xlu0 %v729, 32
  %v732 = vpop.permute.xlu0 %731
  %v734 = vadd.f32 %v724, %v732
  %v735 = vtanh.pop %v734
  %737 = vrot.lane.b32.xlu0 %v735, 32
  %v738 = vpop.permute.xlu0 %737
  %v740 = vmul.f32 %v722, %v738
  %s741 = scalar_lea.vmem %s0, 14
  %v742 = vld [vmem:[%s741] sm:$0x3]
  %744 = vrot.lane.b32.xlu0 %v740, 64
  %v745 = vpop.permute.xlu0 %744
  %v746 = vsel %vm30, %v745, 0
  %748 = vmatprep.subr.mxu0 0.0
  %749 = vmatpush1.msra.mxu0 %v26
  %750 = vmatprep.subr.mxu0 0.0
  %751 = vmatpush1.msra.mxu0 %v27
  %752 = vmatprep.subr.mxu0 0.0
  %753 = vmatpush1.msra.mxu0 %v28
  %754 = vmatprep.subr.mxu0 0.0
  %755 = vmatpush1.msra.mxu0 %v29
  %756 = vmatprep.subr.mxu0 0.0
  %757 = vmatpush1.msra.mxu0 0.0
  %758 = vmatprep.subr.mxu0 0.0
  %759 = vmatpush1.msra.mxu0 0.0
  %760 = vmatprep.subr.mxu0 0.0
  %761 = vmatpush1.msra.mxu0 0.0
  %762 = vmatprep.subr.mxu0 0.0
  %763 = vmatpush1.msra.mxu0 0.0
  %764 = vmatprep.subr.mxu0 0.0
  %765 = vmatpush1.msra.mxu0 0.0
  %766 = vmatprep.subr.mxu0 0.0
  %767 = vmatpush1.msra.mxu0 0.0
  %768 = vmatprep.subr.mxu0 0.0
  %769 = vmatpush1.msra.mxu0 0.0
  %770 = vmatprep.subr.mxu0 0.0
  %771 = vmatpush1.msra.mxu0 0.0
  %772 = vmatprep.subr.mxu0 0.0
  %773 = vmatpush1.msra.mxu0 0.0
  %774 = vmatprep.subr.mxu0 0.0
  %775 = vmatpush1.msra.mxu0 0.0
  %776 = vmatprep.subr.mxu0 0.0
  %777 = vmatpush1.msra.mxu0 0.0
  %778 = vmatprep.subr.mxu0 0.0
  %779 = vmatpush1.msra.mxu0 0.0
  %780 = vmatprep.subr.mxu0 0.0
  %781 = vmatpush1.msra.mxu0 0.0
  %782 = vmatprep.subr.mxu0 0.0
  %783 = vmatpush1.msra.mxu0 0.0
  %784 = vmatprep.subr.mxu0 0.0
  %785 = vmatpush1.msra.mxu0 0.0
  %786 = vmatprep.subr.mxu0 0.0
  %787 = vmatpush1.msra.mxu0 0.0
  %788 = vmatprep.subr.mxu0 0.0
  %789 = vmatpush1.msra.mxu0 0.0
  %790 = vmatprep.subr.mxu0 0.0
  %791 = vmatpush1.msra.mxu0 0.0
  %792 = vmatprep.subr.mxu0 0.0
  %793 = vmatpush1.msra.mxu0 0.0
  %794 = vmatprep.subr.mxu0 0.0
  %795 = vmatpush1.msra.mxu0 0.0
  %796 = vmatprep.subr.mxu0 0.0
  %797 = vmatpush1.msra.mxu0 0.0
  %798 = vmatprep.subr.mxu0 0.0
  %799 = vmatpush1.msra.mxu0 0.0
  %800 = vmatprep.subr.mxu0 0.0
  %801 = vmatpush1.msra.mxu0 0.0
  %802 = vmatprep.subr.mxu0 0.0
  %803 = vmatpush1.msra.mxu0 0.0
  %804 = vmatprep.subr.mxu0 0.0
  %805 = vmatpush1.msra.mxu0 0.0
  %806 = vmatprep.subr.mxu0 0.0
  %807 = vmatpush1.msra.mxu0 0.0
  %808 = vmatprep.subr.mxu0 0.0
  %809 = vmatpush1.msra.mxu0 0.0
  %810 = vmatprep.subr.mxu0 0.0
  %811 = vmatpush1.msra.mxu0 0.0
  %812 = vmatprep.mubr.f32.mxu0 0.0
  %813 = vmatmul.mubr.f32.gmra.mrb[0].mxu0 %v746
  %v814 = vpop.f32.mrb[0].mxu0
  %v815 = vadd.f32 0.0, %v814
  %v816 = vpop.f32.mrb[0].mxu0
  %817 = vdwg.mxu0
  %v818 = vadd.f32 %v742, %v815
  %v819 = vxor.u32 %v818, 2147483648
  %v820 = vmul.f32 %v819, 1.442695
  %v821 = vpow.pop %v820
  %v822 = vadd.f32 %v821, 1.0
  %v823 = vrcp.pop %v822
  %v824 = vmul.f32 1.0, %v823
  %v825 = vtanh.pop %v818
  %v826 = vmul.f32 %v824, %v734
  %828 = vrot.lane.b32.xlu0 %v825, 32
  %v829 = vpop.permute.xlu0 %828
  %v831 = vmul.f32 %v824, %v829
  %833 = vrot.lane.b32.xlu0 %v831, 32
  %v834 = vpop.permute.xlu0 %833
  %v836 = vadd.f32 %v826, %v834
  %v837 = vtanh.pop %v836
  %839 = vrot.lane.b32.xlu0 %v837, 32
  %v840 = vpop.permute.xlu0 %839
  %v842 = vmul.f32 %v824, %v840
  %v843 = vld [vmem:[%s2] sm:$0xff]
  %v844 = vld [vmem:[%s2 + $0x8] sm:$0xff]
  %v845 = vld [vmem:[%s2 + $0x10] sm:$0xff]
  %v846 = vld [vmem:[%s2 + $0x18] sm:$0xff]
  %v847 = vld [vmem:[%s3] sm:$0x1]
  %v849 = vlaneseq
  %v850 = vshrl.u32 %v849, 7
  %v851 = vsub.s32 0, %v850
  %v852 = vrot.slane %v847, %v851
  %855 = vrot.lane.b32.xlu0 %v842, 64
  %v856 = vpop.permute.xlu0 %855
  %v857 = vsel %vm30, %v856, 0
  %859 = vmatprep.subr.mxu0 0.0
  %860 = vmatpush1.msra.mxu0 %v843
  %861 = vmatprep.subr.mxu0 0.0
  %862 = vmatpush1.msra.mxu0 %v844
  %863 = vmatprep.subr.mxu0 0.0
  %864 = vmatpush1.msra.mxu0 %v845
  %865 = vmatprep.subr.mxu0 0.0
  %866 = vmatpush1.msra.mxu0 %v846
  %867 = vmatprep.subr.mxu0 0.0
  %868 = vmatpush1.msra.mxu0 0.0
  %869 = vmatprep.subr.mxu0 0.0
  %870 = vmatpush1.msra.mxu0 0.0
  %871 = vmatprep.subr.mxu0 0.0
  %872 = vmatpush1.msra.mxu0 0.0
  %873 = vmatprep.subr.mxu0 0.0
  %874 = vmatpush1.msra.mxu0 0.0
  %875 = vmatprep.subr.mxu0 0.0
  %876 = vmatpush1.msra.mxu0 0.0
  %877 = vmatprep.subr.mxu0 0.0
  %878 = vmatpush1.msra.mxu0 0.0
  %879 = vmatprep.subr.mxu0 0.0
  %880 = vmatpush1.msra.mxu0 0.0
  %881 = vmatprep.subr.mxu0 0.0
  %882 = vmatpush1.msra.mxu0 0.0
  %883 = vmatprep.subr.mxu0 0.0
  %884 = vmatpush1.msra.mxu0 0.0
  %885 = vmatprep.subr.mxu0 0.0
  %886 = vmatpush1.msra.mxu0 0.0
  %887 = vmatprep.subr.mxu0 0.0
  %888 = vmatpush1.msra.mxu0 0.0
  %889 = vmatprep.subr.mxu0 0.0
  %890 = vmatpush1.msra.mxu0 0.0
  %891 = vmatprep.subr.mxu0 0.0
  %892 = vmatpush1.msra.mxu0 0.0
  %893 = vmatprep.subr.mxu0 0.0
  %894 = vmatpush1.msra.mxu0 0.0
  %895 = vmatprep.subr.mxu0 0.0
  %896 = vmatpush1.msra.mxu0 0.0
  %897 = vmatprep.subr.mxu0 0.0
  %898 = vmatpush1.msra.mxu0 0.0
  %899 = vmatprep.subr.mxu0 0.0
  %900 = vmatpush1.msra.mxu0 0.0
  %901 = vmatprep.subr.mxu0 0.0
  %902 = vmatpush1.msra.mxu0 0.0
  %903 = vmatprep.subr.mxu0 0.0
  %904 = vmatpush1.msra.mxu0 0.0
  %905 = vmatprep.subr.mxu0 0.0
  %906 = vmatpush1.msra.mxu0 0.0
  %907 = vmatprep.subr.mxu0 0.0
  %908 = vmatpush1.msra.mxu0 0.0
  %909 = vmatprep.subr.mxu0 0.0
  %910 = vmatpush1.msra.mxu0 0.0
  %911 = vmatprep.subr.mxu0 0.0
  %912 = vmatpush1.msra.mxu0 0.0
  %913 = vmatprep.subr.mxu0 0.0
  %914 = vmatpush1.msra.mxu0 0.0
  %915 = vmatprep.subr.mxu0 0.0
  %916 = vmatpush1.msra.mxu0 0.0
  %917 = vmatprep.subr.mxu0 0.0
  %918 = vmatpush1.msra.mxu0 0.0
  %919 = vmatprep.subr.mxu0 0.0
  %920 = vmatpush1.msra.mxu0 0.0
  %921 = vmatprep.subr.mxu0 0.0
  %922 = vmatpush1.msra.mxu0 0.0
  %923 = vmatprep.mubr.f32.mxu0 0.0
  %924 = vmatmul.mubr.f32.gmra.mrb[0].mxu0 %v857
  %v925 = vpop.f32.mrb[0].mxu0
  %v926 = vadd.f32 %v852, %v925
  %v927 = vpop.f32.mrb[0].mxu0
  %928 = vdwg.mxu0
  %v929 = vmax.f32 %v926, 0.0
  %v930 = vld [vmem:[%s4] sm:$0xff]
  %v931 = vld [vmem:[%s4 + $0x8] sm:$0xff]
  %v932 = vld [vmem:[#allocation2] sm:$0x1]
  %v934 = vlaneseq
  %v935 = vshrl.u32 %v934, 7
  %v936 = vsub.s32 0, %v935
  %v937 = vrot.slane %v932, %v936
  %vm939 = vcmask 130048
  %v941 = vsel %vm939, %v929, 0
  %943 = vmatprep.subr.mxu0 0.0
  %944 = vmatpush1.msra.mxu0 %v930
  %945 = vmatprep.subr.mxu0 0.0
  %946 = vmatpush1.msra.mxu0 %v931
  %947 = vmatprep.subr.mxu0 0.0
  %948 = vmatpush1.msra.mxu0 0.0
  %949 = vmatprep.subr.mxu0 0.0
  %950 = vmatpush1.msra.mxu0 0.0
  %951 = vmatprep.subr.mxu0 0.0
  %952 = vmatpush1.msra.mxu0 0.0
  %953 = vmatprep.subr.mxu0 0.0
  %954 = vmatpush1.msra.mxu0 0.0
  %955 = vmatprep.subr.mxu0 0.0
  %956 = vmatpush1.msra.mxu0 0.0
  %957 = vmatprep.subr.mxu0 0.0
  %958 = vmatpush1.msra.mxu0 0.0
  %959 = vmatprep.subr.mxu0 0.0
  %960 = vmatpush1.msra.mxu0 0.0
  %961 = vmatprep.subr.mxu0 0.0
  %962 = vmatpush1.msra.mxu0 0.0
  %963 = vmatprep.subr.mxu0 0.0
  %964 = vmatpush1.msra.mxu0 0.0
  %965 = vmatprep.subr.mxu0 0.0
  %966 = vmatpush1.msra.mxu0 0.0
  %967 = vmatprep.subr.mxu0 0.0
  %968 = vmatpush1.msra.mxu0 0.0
  %969 = vmatprep.subr.mxu0 0.0
  %970 = vmatpush1.msra.mxu0 0.0
  %971 = vmatprep.subr.mxu0 0.0
  %972 = vmatpush1.msra.mxu0 0.0
  %973 = vmatprep.subr.mxu0 0.0
  %974 = vmatpush1.msra.mxu0 0.0
  %975 = vmatprep.subr.mxu0 0.0
  %976 = vmatpush1.msra.mxu0 0.0
  %977 = vmatprep.subr.mxu0 0.0
  %978 = vmatpush1.msra.mxu0 0.0
  %979 = vmatprep.subr.mxu0 0.0
  %980 = vmatpush1.msra.mxu0 0.0
  %981 = vmatprep.subr.mxu0 0.0
  %982 = vmatpush1.msra.mxu0 0.0
  %983 = vmatprep.subr.mxu0 0.0
  %984 = vmatpush1.msra.mxu0 0.0
  %985 = vmatprep.subr.mxu0 0.0
  %986 = vmatpush1.msra.mxu0 0.0
  %987 = vmatprep.subr.mxu0 0.0
  %988 = vmatpush1.msra.mxu0 0.0
  %989 = vmatprep.subr.mxu0 0.0
  %990 = vmatpush1.msra.mxu0 0.0
  %991 = vmatprep.subr.mxu0 0.0
  %992 = vmatpush1.msra.mxu0 0.0
  %993 = vmatprep.subr.mxu0 0.0
  %994 = vmatpush1.msra.mxu0 0.0
  %995 = vmatprep.subr.mxu0 0.0
  %996 = vmatpush1.msra.mxu0 0.0
  %997 = vmatprep.subr.mxu0 0.0
  %998 = vmatpush1.msra.mxu0 0.0
  %999 = vmatprep.subr.mxu0 0.0
  %1000 = vmatpush1.msra.mxu0 0.0
  %1001 = vmatprep.subr.mxu0 0.0
  %1002 = vmatpush1.msra.mxu0 0.0
  %1003 = vmatprep.subr.mxu0 0.0
  %1004 = vmatpush1.msra.mxu0 0.0
  %1005 = vmatprep.subr.mxu0 0.0
  %1006 = vmatpush1.msra.mxu0 0.0
  %1007 = vmatprep.mubr.f32.mxu0 0.0
  %1008 = vmatmul.mubr.f32.gmra.mrb[0].mxu0 %v941
  %v1009 = vpop.f32.mrb[0].mxu0
  %v1010 = vadd.f32 %v937, %v1009
  %v1011 = vpop.f32.mrb[0].mxu0
  %1012 = vdwg.mxu0
  %vm1013 = vcmask 1024
  %1014 = vst.msk [vmem:[%s6] sm:$0x3] %vm1013, %v1010
  // Predicated region
  $region26: #{tpu_custom_call.1} parent=0 // pred_check
    _
  $region27: #{tpu_custom_call.1} parent=0 // pred_check_branch
    %1016 = sbr.rel (0) target = $region29
  $region28: #{tpu_custom_call.1} parent=0 // pred_region
    _
  $region29: #{tpu_custom_call.1} parent=0 // pred_fallthru
    _
  // Predicated region
  $region30: #{tpu_custom_call.1} parent=0 // pred_check
    _
  $region31: #{tpu_custom_call.1} parent=0 // pred_check_branch
    %1018 = sbr.rel (0) target = $region33
  $region32: #{tpu_custom_call.1} parent=0 // pred_region
    _
  $region33: #{tpu_custom_call.1} parent=0 // pred_fallthru
    _

</llo_original>
